<compile_context>
chip_gen: v7x
topology: tpu7x:2x2x1
jax: 0.10.0
libtpu: 0.0.40
codegen_flags: <defaults>
</compile_context>

<pallas_src>
import functools

import jax
import jax.numpy as jnp
from jax.experimental import pallas as pl
from jax.experimental.pallas import tpu as pltpu

C_IN = 512   # num_ins_inputs with cfg.DA.DA_INS.RESHAPE == False
H1 = 256     # conv1_da out channels
H2 = 256     # conv2_da out channels
# TODO(synk): RESHAPE=True path (in_channels = 512*64) would need K-tiling of the
#             conv1 weight (32 MiB); not implemented here.


def _da_ins_head_kernel(x_ref, w1_ref, b1_ref, w2_ref, b2_ref, w3_ref, b3_ref, o_ref):
    """One row-tile of the fused 3-layer 1x1-conv head.

    x_ref:  (bm, 512) rows, f32 (channels on lanes)
    w1_ref: (512, 256) [bf16 or f32], b1_ref: (1, 256) f32
    w2_ref: (256, 256) [bf16 or f32], b2_ref: (1, 256) f32
    w3_ref: (1, 256) f32   -- conv3 weight as a row vector
    b3_ref: (1,) SMEM scalar
    o_ref:  (bm, 1) f32
    """
    # In-kernel activation cast: x stays f32 in HBM (single read), the bf16
    # convert is a VPU op fused into this step -> full bf16 MXU rate with zero
    # extra HBM passes.  No-op when weights are f32.
    x = x_ref[...].astype(w1_ref.dtype)
    t = jnp.dot(x, w1_ref[...], preferred_element_type=jnp.float32) + b1_ref[...]
    t = jnp.maximum(t, 0.0)
    t = jnp.dot(t.astype(w2_ref.dtype), w2_ref[...],
                preferred_element_type=jnp.float32) + b2_ref[...]
    t = jnp.maximum(t, 0.0)
    # conv3_da (256 -> 1): VPU multiply + XLU lane reduce instead of a 1-column
    # MXU matmul (which would waste the MXU output columns).
    o = jnp.sum(t * w3_ref[...], axis=-1, keepdims=True) + b3_ref[0]
    o_ref[...] = o.astype(o_ref.dtype)


def _choose_block_rows(M, tm):
    """Pick a row tile giving an EVEN number of roughly balanced blocks of size
    <= tm (multiple of 8), so the 'parallel' grid axis splits evenly across
    v7x's two TensorCores and each core gets >= 1 step of DMA/compute overlap.
    Tiny M falls back to a single full block (always layout-legal)."""
    tm = max(8, (tm // 8) * 8)
    if M <= 16:
        return M
    pairs = max(1, pl.cdiv(M, 2 * tm))          # number of 2-block groups
    bm = pl.cdiv(pl.cdiv(M, 2 * pairs), 8) * 8  # balanced block size, mult of 8
    return max(8, min(bm, tm))


@functools.partial(jax.jit, static_argnames=("tm", "use_bf16"))
def da_rcnn_forward(ins_features, w1, b1, w2, b2, w3, b3, *, tm=2048, use_bf16=True):
    """ins_features: (B*64, 512, 1) float32 (PyTorch Conv1d NCW layout, W == 1)."""
    M, C, W = ins_features.shape
    assert W == 1 and C == C_IN

    # GradientScalarLayer: identity in the forward pass (only scales gradients).
    # TODO(synk): backward gradient scaling (weight = -GRL_WEIGHT) needs a
    #             jax.custom_vjp; this kernel is forward/inference only.

    # (M, 512, 1) -> (M, 512): free reshape (trailing unit dim), no transpose,
    # channels already sit on the 128-lane axis.
    x = ins_features.reshape(M, C)

    if use_bf16:
        # Cast WEIGHTS only (0.77 MiB, one-time / cacheable by the caller).
        # Activations are cast inside the kernel so the f32 x stream is read
        # from HBM exactly once (no standalone convert pass).
        w1 = w1.astype(jnp.bfloat16)
        w2 = w2.astype(jnp.bfloat16)

    bm = _choose_block_rows(M, tm)
    grid = pl.cdiv(M, bm)   # ragged last block handled by Pallas masking

    const_map = lambda i: (0, 0)
    resident = pl.Buffered(1)   # constant index_map => no re-DMA; single buffer

    out = pl.pallas_call(
        _da_ins_head_kernel,
        out_shape=jax.ShapeDtypeStruct((M, 1), jnp.float32),
        grid_spec=pltpu.PrefetchScalarGridSpec(
            num_scalar_prefetch=0,
            grid=(grid,),
            in_specs=[
                pl.BlockSpec((bm, C), lambda i: (i, 0)),    # x row tile
                # Weights/biases: constant index_maps, single-buffered (saves
                # ~0.77 MiB of VMEM and warm-up DMAs vs default double-buffer).
                pl.BlockSpec((C, H1), const_map, pipeline_mode=resident),   # W1
                pl.BlockSpec((1, H1), const_map, pipeline_mode=resident),   # b1
                pl.BlockSpec((H1, H2), const_map, pipeline_mode=resident),  # W2
                pl.BlockSpec((1, H2), const_map, pipeline_mode=resident),   # b2
                pl.BlockSpec((1, H2), const_map, pipeline_mode=resident),   # W3 row
                pl.BlockSpec(memory_space=pltpu.MemorySpace.SMEM),          # b3 scalar
            ],
            out_specs=pl.BlockSpec((bm, 1), lambda i: (i, 0)),
        ),
        compiler_params=pltpu.CompilerParams(
            dimension_semantics=("parallel",),
        ),
    )(x, w1, b1, w2, b2, w3, b3)

    # (M, 1) -> (M, 1, 1): matches PyTorch Conv1d output layout for W == 1.
    return {"da_ins": out.reshape(M, 1, 1)}


def init_params(key, std=0.001, bias_std=0.0):
    """Defaults mirror DAInsHead.__init__: normal(std=0.001) weights, zero bias.

    Weights are stored pre-transposed for right-multiplication:
      w1 = conv1_da.weight[:, :, 0].T -> (512, 256)
      w2 = conv2_da.weight[:, :, 0].T -> (256, 256)
      w3 = conv3_da.weight[:, :, 0]   -> (1, 256)
    """
    k = jax.random.split(key, 6)
    w1 = std * jax.random.normal(k[0], (C_IN, H1), dtype=jnp.float32)
    w2 = std * jax.random.normal(k[1], (H1, H2), dtype=jnp.float32)
    w3 = std * jax.random.normal(k[2], (1, H2), dtype=jnp.float32)
    b1 = bias_std * jax.random.normal(k[3], (1, H1), dtype=jnp.float32)
    b2 = bias_std * jax.random.normal(k[4], (1, H2), dtype=jnp.float32)
    b3 = bias_std * jax.random.normal(k[5], (1,), dtype=jnp.float32)
    return w1, b1, w2, b2, w3, b3


def reference_forward(ins_features, w1, b1, w2, b2, w3, b3):
    """Plain-JAX reference of the same forward pass (high-precision f32 matmuls)."""
    hi = jax.lax.Precision.HIGHEST
    x = ins_features[:, :, 0]
    t = jnp.maximum(jnp.dot(x, w1, precision=hi) + b1, 0.0)
    t = jnp.maximum(jnp.dot(t, w2, precision=hi) + b2, 0.0)
    o = jnp.dot(t, w3.T, precision=hi) + b3
    return o.reshape(x.shape[0], 1, 1)


if __name__ == "__main__":
    key = jax.random.PRNGKey(0)
    kx1, kx2, kp = jax.random.split(key, 3)

    # Module-consistent small shape: ins_features is (B*64, 512, 1) with B=2.
    B = 2
    M = B * 64
    ins = jax.random.normal(kx1, (M, C_IN, 1), dtype=jnp.float32)
    # The module's init is std=0.001 / zero bias (see init_params defaults); use a
    # larger std and nonzero biases here so the numerical cross-check is meaningful.
    params = init_params(kp, std=0.05, bias_std=0.5)

    ref = reference_forward(ins, *params)
    scale = float(jnp.max(jnp.abs(ref)))

    # Default path: bf16 MXU matmuls (f32 accumulation), in-kernel activation cast.
    # tm=128 keeps the test grid at 2 balanced 64-row blocks.
    out = da_rcnn_forward(ins, *params, tm=128)
    jax.block_until_ready(out["da_ins"])
    assert out["da_ins"].shape == (M, 1, 1)
    err = float(jnp.max(jnp.abs(out["da_ins"] - ref)))
    assert err <= 2e-2 * scale + 1e-3, (err, scale)

    # Full-f32 path: tight-tolerance cross-check of the kernel structure.
    out_f32 = da_rcnn_forward(ins, *params, tm=128, use_bf16=False)
    jax.block_until_ready(out_f32["da_ins"])
    err_f32 = float(jnp.max(jnp.abs(out_f32["da_ins"] - ref)))
    assert err_f32 <= 1e-3 * scale + 1e-5, (err_f32, scale)

    # Multi-block, balanced split: M=192 rows, tm=128 -> two 96-row blocks
    # (exercises the even 2-TC load-balance path, no ragged block).
    M2 = 3 * 64
    ins2 = jax.random.normal(kx2, (M2, C_IN, 1), dtype=jnp.float32)
    out2 = da_rcnn_forward(ins2, *params, tm=128)
    jax.block_until_ready(out2["da_ins"])
    ref2 = reference_forward(ins2, *params)
    assert out2["da_ins"].shape == (M2, 1, 1)
    err2 = float(jnp.max(jnp.abs(out2["da_ins"] - ref2)))
    scale2 = float(jnp.max(jnp.abs(ref2)))
    assert err2 <= 2e-2 * scale2 + 1e-3, (err2, scale2)

    # Ragged last block robustness: M=140 rows, bm=72 -> grid=2 with a masked
    # 68-row second block (exercises the Pallas masked input/output path).
    M3 = 140
    ins3 = jax.random.normal(jax.random.PRNGKey(7), (M3, C_IN, 1), dtype=jnp.float32)
    out3 = da_rcnn_forward(ins3, *params, tm=128)
    jax.block_until_ready(out3["da_ins"])
    ref3 = reference_forward(ins3, *params)
    assert out3["da_ins"].shape == (M3, 1, 1)
    err3 = float(jnp.max(jnp.abs(out3["da_ins"] - ref3)))
    scale3 = float(jnp.max(jnp.abs(ref3)))
    assert err3 <= 2e-2 * scale3 + 1e-3, (err3, scale3)

    print("KERNEL_OK")
</pallas_src>

<mosaic_0001>
module attributes {stable_mosaic.version = 11 : i64} {
  func.func @_da_ins_head_kernel(%arg0: i32, %arg1: memref<64x512xf32, #tpu.memory_space<vmem>>, %arg2: memref<512x256xbf16, #tpu.memory_space<vmem>>, %arg3: memref<1x256xf32, #tpu.memory_space<vmem>>, %arg4: memref<256x256xbf16, #tpu.memory_space<vmem>>, %arg5: memref<1x256xf32, #tpu.memory_space<vmem>>, %arg6: memref<1x256xf32, #tpu.memory_space<vmem>>, %arg7: memref<1xf32, #tpu.memory_space<smem>>, %arg8: memref<64x1xf32, #tpu.memory_space<vmem>>) attributes {dimension_semantics = [#tpu.dimension_semantics<parallel>], iteration_bounds = array<i64: 2>, scalar_prefetch = 0 : i64, scratch_operands = 0 : i64, tpu.core_type = #tpu.core_type<tc>, window_params = [{transform_indices = @transform_0, window_bounds = array<i64: 64, 512>}, {pipeline_mode = #tpu.pipeline_mode<synchronous>, transform_indices = @transform_1, window_bounds = array<i64: 512, 256>}, {pipeline_mode = #tpu.pipeline_mode<synchronous>, transform_indices = @transform_2, window_bounds = array<i64: 1, 256>}, {pipeline_mode = #tpu.pipeline_mode<synchronous>, transform_indices = @transform_3, window_bounds = array<i64: 256, 256>}, {pipeline_mode = #tpu.pipeline_mode<synchronous>, transform_indices = @transform_4, window_bounds = array<i64: 1, 256>}, {pipeline_mode = #tpu.pipeline_mode<synchronous>, transform_indices = @transform_5, window_bounds = array<i64: 1, 256>}, {transform_indices = @transform_6, window_bounds = array<i64: 1>}, {transform_indices = @transform_7, window_bounds = array<i64: 64, 1>}]} {
    %c0 = arith.constant 0 : index
    %c0_0 = arith.constant 0 : index
    %0 = vector.load %arg1[%c0, %c0_0] : memref<64x512xf32, #tpu.memory_space<vmem>>, vector<64x512xf32>
    %1 = arith.truncf %0 : vector<64x512xf32> to vector<64x512xbf16>
    %c0_1 = arith.constant 0 : index
    %c0_2 = arith.constant 0 : index
    %2 = vector.load %arg2[%c0_1, %c0_2] : memref<512x256xbf16, #tpu.memory_space<vmem>>, vector<512x256xbf16>
    %cst = arith.constant dense<0.000000e+00> : vector<64x256xf32>
    %3 = tpu.matmul %1, %2, %cst {dimension_numbers = #tpu.dot_dimension_numbers<[1], [0], [0], [1], [0, 0, 1, 1], [], []>} : vector<64x512xbf16>, vector<512x256xbf16>, vector<64x256xf32> -> vector<64x256xf32>
    %c0_3 = arith.constant 0 : index
    %c0_4 = arith.constant 0 : index
    %4 = vector.load %arg3[%c0_3, %c0_4] : memref<1x256xf32, #tpu.memory_space<vmem>>, vector<1x256xf32>
    %5 = vector.broadcast %4 : vector<1x256xf32> to vector<64x256xf32>
    %6 = arith.addf %3, %5 : vector<64x256xf32>
    %cst_5 = arith.constant 0.000000e+00 : f32
    %7 = vector.broadcast %cst_5 : f32 to vector<64x256xf32>
    %8 = arith.maximumf %6, %7 : vector<64x256xf32>
    %9 = arith.truncf %8 : vector<64x256xf32> to vector<64x256xbf16>
    %c0_6 = arith.constant 0 : index
    %c0_7 = arith.constant 0 : index
    %10 = vector.load %arg4[%c0_6, %c0_7] : memref<256x256xbf16, #tpu.memory_space<vmem>>, vector<256x256xbf16>
    %cst_8 = arith.constant dense<0.000000e+00> : vector<64x256xf32>
    %11 = tpu.matmul %9, %10, %cst_8 {dimension_numbers = #tpu.dot_dimension_numbers<[1], [0], [0], [1], [0, 0, 1, 1], [], []>} : vector<64x256xbf16>, vector<256x256xbf16>, vector<64x256xf32> -> vector<64x256xf32>
    %c0_9 = arith.constant 0 : index
    %c0_10 = arith.constant 0 : index
    %12 = vector.load %arg5[%c0_9, %c0_10] : memref<1x256xf32, #tpu.memory_space<vmem>>, vector<1x256xf32>
    %13 = vector.broadcast %12 : vector<1x256xf32> to vector<64x256xf32>
    %14 = arith.addf %11, %13 : vector<64x256xf32>
    %cst_11 = arith.constant 0.000000e+00 : f32
    %15 = vector.broadcast %cst_11 : f32 to vector<64x256xf32>
    %16 = arith.maximumf %14, %15 : vector<64x256xf32>
    %c0_12 = arith.constant 0 : index
    %c0_13 = arith.constant 0 : index
    %17 = vector.load %arg6[%c0_12, %c0_13] : memref<1x256xf32, #tpu.memory_space<vmem>>, vector<1x256xf32>
    %18 = vector.broadcast %17 : vector<1x256xf32> to vector<64x256xf32>
    %19 = arith.mulf %16, %18 : vector<64x256xf32>
    %cst_14 = arith.constant dense<0.000000e+00> : vector<64xf32>
    %20 = vector.multi_reduction <add>, %19, %cst_14 [1] : vector<64x256xf32> to vector<64xf32>
    %21 = vector.shape_cast %20 : vector<64xf32> to vector<64x1xf32>
    %c0_15 = arith.constant 0 : index
    %22 = memref.load %arg7[%c0_15] : memref<1xf32, #tpu.memory_space<smem>>
    %23 = vector.broadcast %22 : f32 to vector<64x1xf32>
    %24 = arith.addf %21, %23 : vector<64x1xf32>
    %c0_16 = arith.constant 0 : index
    %c0_17 = arith.constant 0 : index
    %25 = vector.load %arg8[%c0_16, %c0_17] : memref<64x1xf32, #tpu.memory_space<vmem>>, vector<64x1xf32>
    tpu.vector_store %arg8[%c0_16, %c0_17], %24 {strides = array<i32>} : memref<64x1xf32, #tpu.memory_space<vmem>>, vector<64x1xf32>,
    return
  }
  func.func @transform_0(%arg0: i32) -> (i32, i32) {
    %c0_i32 = arith.constant 0 : i32
    %c0_i32_0 = arith.constant 0 : i32
    return %arg0, %c0_i32 : i32, i32
  }
  func.func @transform_1(%arg0: i32) -> (i32, i32) {
    %c0_i32 = arith.constant 0 : i32
    %c0_i32_0 = arith.constant 0 : i32
    %c0_i32_1 = arith.constant 0 : i32
    return %c0_i32, %c0_i32_0 : i32, i32
  }
  func.func @transform_2(%arg0: i32) -> (i32, i32) {
    %c0_i32 = arith.constant 0 : i32
    %c0_i32_0 = arith.constant 0 : i32
    %c0_i32_1 = arith.constant 0 : i32
    return %c0_i32, %c0_i32_0 : i32, i32
  }
  func.func @transform_3(%arg0: i32) -> (i32, i32) {
    %c0_i32 = arith.constant 0 : i32
    %c0_i32_0 = arith.constant 0 : i32
    %c0_i32_1 = arith.constant 0 : i32
    return %c0_i32, %c0_i32_0 : i32, i32
  }
  func.func @transform_4(%arg0: i32) -> (i32, i32) {
    %c0_i32 = arith.constant 0 : i32
    %c0_i32_0 = arith.constant 0 : i32
    %c0_i32_1 = arith.constant 0 : i32
    return %c0_i32, %c0_i32_0 : i32, i32
  }
  func.func @transform_5(%arg0: i32) -> (i32, i32) {
    %c0_i32 = arith.constant 0 : i32
    %c0_i32_0 = arith.constant 0 : i32
    %c0_i32_1 = arith.constant 0 : i32
    return %c0_i32, %c0_i32_0 : i32, i32
  }
  func.func @transform_6(%arg0: i32) -> i32 {
    %c0_i32 = arith.constant 0 : i32
    %c0_i32_0 = arith.constant 0 : i32
    return %c0_i32 : i32
  }
  func.func @transform_7(%arg0: i32) -> (i32, i32) {
    %c0_i32 = arith.constant 0 : i32
    %c0_i32_0 = arith.constant 0 : i32
    return %arg0, %c0_i32 : i32, i32
  }
}

</mosaic_0001>

<llo_original>
// kernel: da_rcnn_forward.1
$region0: #{da_rcnn_forward.1}
  #allocation0 [shape = 'u32[]', space=smem, size = 0x4, offset = 0x4, fixed_abs, tag = 'smem constant byte address 0x4 - core index']
  #allocation1 [shape = 'u32[144,128]{1,0:T(1,128)}', space=vmem, size = 0x12000, scoped, tag = 'internal scratch']
  #allocation2 [shape = 'f32[1]{0:T(128)S(6)}', space=smem, size = 0x200, scoped, tag = 'scoped memory for da_rcnn_forward.1']
  %s0 = inlined_call_operand.vmem [shape: f32[128,512], index: 0, kind: input, shape index: {}]
  %s1 = inlined_call_operand.vmem [shape: bf16[512,256], index: 1, kind: input, shape index: {}]
  %s2 = inlined_call_operand.vmem [shape: f32[1,256], index: 2, kind: input, shape index: {}]
  %s3 = inlined_call_operand.vmem [shape: bf16[256,256], index: 3, kind: input, shape index: {}]
  %s4 = inlined_call_operand.vmem [shape: f32[1,256], index: 4, kind: input, shape index: {}]
  %s5 = inlined_call_operand.vmem [shape: f32[1,256], index: 5, kind: input, shape index: {}]
  %s6 = inlined_call_operand.<no memory space> [shape: f32[1], index: 6, kind: input, shape index: {}]
  %s7 = inlined_call_operand.vmem [shape: f32[128,1], index: 7, kind: output, shape index: {}]
  %s8 = sld [smem:[#allocation0]]
  $region61: #{da_rcnn_forward.1} parent=0
    _
  %s10 = ssub.s32 1, %s8
  %s11 = scalar_select 0, %s10, %s8
  %12 = sst [smem:[#allocation2]] %s6
  loop: start=0, step=1, limit=4
  $region2: #{da_rcnn_forward.1} parent=0 // loop_pre_header
    _
  $region3: #{da_rcnn_forward.1} parent=0 // loop_header
    %s14 = sphi 0, %s18
    %p15 = scmp.ge.s32.totalorder %s14, 4
    %s24 = sphi 0, %s26
    %s27 = sphi 0, %s24
    %s28 = sphi 0, %s27
    %s44 = sphi 0, %s28
    %s48 = sphi 0, %s48
    %s50 = sphi 0, %s48
    %s51 = sphi 0, %s50
    %s65 = sphi 0, %s51
    %s69 = sphi 0, %s69
    %s71 = sphi 0, %s69
    %s72 = sphi 0, %s71
    %s86 = sphi 0, %s72
    %s90 = sphi 0, %s90
    %s92 = sphi 0, %s90
    %s93 = sphi 0, %s92
    %s107 = sphi 0, %s93
    %s111 = sphi 0, %s111
    %s113 = sphi 0, %s111
    %s114 = sphi 0, %s113
    %s128 = sphi 0, %s114
    %s132 = sphi 0, %s132
    %s134 = sphi 0, %s132
    %s135 = sphi 0, %s134
    %s149 = sphi 0, %s135
    %s153 = sphi 0, %s153
    %s155 = sphi 0, %s153
    %s156 = sphi 0, %s155
    %s170 = sphi 0, %s156
    %s176 = sphi 0, %s178
    %s179 = sphi 0, %s176
    %s180 = sphi 0, %s179
    %s196 = sphi 0, %s180
  $region4: #{da_rcnn_forward.1} parent=0 // loop_header_branch
    %17 = sbr.rel (%p15) target = $region8
  $region5: #{da_rcnn_forward.1} parent=0 // loop_body
    %s19 = ssub.s32 %s14, 1
    %s20 = ssub.s32 %s14, 2
    %s21 = sadd.s32 %s14, 1
    %s22 = ssub.s32 %s14, %s21
    %p23 = scmp.eq.s32.totalorder %s22, 0
    %s25 = sadd.s32 %s24, 1
    %s26 = scalar_select %p23, %s24, %s25
    %p29 = pneg %p23
    %p30 = scmp.eq.s32.totalorder %s14, 1
    %p31 = por %p29, %p30
    %p32 = scmp.ne.s32.totalorder %s24, %s27
    %p33 = scmp.eq.s32.totalorder %s14, 0
    %p34 = por %p32, %p33
    %p35 = scmp.ne.s32.totalorder %s24, %s27
    %p36 = scmp.eq.s32.totalorder %s19, 1
    %p37 = por %p35, %p36
    %p38 = scmp.ne.s32.totalorder %s27, %s28
    %p39 = scmp.eq.s32.totalorder %s19, 0
    %p40 = por %p38, %p39
    %p41 = scmp.ne.s32.totalorder %s27, %s28
    %p42 = scmp.eq.s32.totalorder %s20, 1
    %p43 = por %p41, %p42
    %p45 = scmp.ne.s32.totalorder %s28, %s44
    %p46 = scmp.eq.s32.totalorder %s20, 0
    %p47 = por %p45, %p46
    %s49 = sadd.s32 %s48, 1
    %p52 = scmp.eq.s32.totalorder %s14, 1
    %p53 = scmp.ne.s32.totalorder %s48, %s50
    %p54 = scmp.eq.s32.totalorder %s14, 0
    %p55 = por %p53, %p54
    %p56 = scmp.ne.s32.totalorder %s48, %s50
    %p57 = scmp.eq.s32.totalorder %s19, 1
    %p58 = por %p56, %p57
    %p59 = scmp.ne.s32.totalorder %s50, %s51
    %p60 = scmp.eq.s32.totalorder %s19, 0
    %p61 = por %p59, %p60
    %p62 = scmp.ne.s32.totalorder %s50, %s51
    %p63 = scmp.eq.s32.totalorder %s20, 1
    %p64 = por %p62, %p63
    %p66 = scmp.ne.s32.totalorder %s51, %s65
    %p67 = scmp.eq.s32.totalorder %s20, 0
    %p68 = por %p66, %p67
    %s70 = sadd.s32 %s69, 1
    %p73 = scmp.eq.s32.totalorder %s14, 1
    %p74 = scmp.ne.s32.totalorder %s69, %s71
    %p75 = scmp.eq.s32.totalorder %s14, 0
    %p76 = por %p74, %p75
    %p77 = scmp.ne.s32.totalorder %s69, %s71
    %p78 = scmp.eq.s32.totalorder %s19, 1
    %p79 = por %p77, %p78
    %p80 = scmp.ne.s32.totalorder %s71, %s72
    %p81 = scmp.eq.s32.totalorder %s19, 0
    %p82 = por %p80, %p81
    %p83 = scmp.ne.s32.totalorder %s71, %s72
    %p84 = scmp.eq.s32.totalorder %s20, 1
    %p85 = por %p83, %p84
    %p87 = scmp.ne.s32.totalorder %s72, %s86
    %p88 = scmp.eq.s32.totalorder %s20, 0
    %p89 = por %p87, %p88
    %s91 = sadd.s32 %s90, 1
    %p94 = scmp.eq.s32.totalorder %s14, 1
    %p95 = scmp.ne.s32.totalorder %s90, %s92
    %p96 = scmp.eq.s32.totalorder %s14, 0
    %p97 = por %p95, %p96
    %p98 = scmp.ne.s32.totalorder %s90, %s92
    %p99 = scmp.eq.s32.totalorder %s19, 1
    %p100 = por %p98, %p99
    %p101 = scmp.ne.s32.totalorder %s92, %s93
    %p102 = scmp.eq.s32.totalorder %s19, 0
    %p103 = por %p101, %p102
    %p104 = scmp.ne.s32.totalorder %s92, %s93
    %p105 = scmp.eq.s32.totalorder %s20, 1
    %p106 = por %p104, %p105
    %p108 = scmp.ne.s32.totalorder %s93, %s107
    %p109 = scmp.eq.s32.totalorder %s20, 0
    %p110 = por %p108, %p109
    %s112 = sadd.s32 %s111, 1
    %p115 = scmp.eq.s32.totalorder %s14, 1
    %p116 = scmp.ne.s32.totalorder %s111, %s113
    %p117 = scmp.eq.s32.totalorder %s14, 0
    %p118 = por %p116, %p117
    %p119 = scmp.ne.s32.totalorder %s111, %s113
    %p120 = scmp.eq.s32.totalorder %s19, 1
    %p121 = por %p119, %p120
    %p122 = scmp.ne.s32.totalorder %s113, %s114
    %p123 = scmp.eq.s32.totalorder %s19, 0
    %p124 = por %p122, %p123
    %p125 = scmp.ne.s32.totalorder %s113, %s114
    %p126 = scmp.eq.s32.totalorder %s20, 1
    %p127 = por %p125, %p126
    %p129 = scmp.ne.s32.totalorder %s114, %s128
    %p130 = scmp.eq.s32.totalorder %s20, 0
    %p131 = por %p129, %p130
    %s133 = sadd.s32 %s132, 1
    %p136 = scmp.eq.s32.totalorder %s14, 1
    %p137 = scmp.ne.s32.totalorder %s132, %s134
    %p138 = scmp.eq.s32.totalorder %s14, 0
    %p139 = por %p137, %p138
    %p140 = scmp.ne.s32.totalorder %s132, %s134
    %p141 = scmp.eq.s32.totalorder %s19, 1
    %p142 = por %p140, %p141
    %p143 = scmp.ne.s32.totalorder %s134, %s135
    %p144 = scmp.eq.s32.totalorder %s19, 0
    %p145 = por %p143, %p144
    %p146 = scmp.ne.s32.totalorder %s134, %s135
    %p147 = scmp.eq.s32.totalorder %s20, 1
    %p148 = por %p146, %p147
    %p150 = scmp.ne.s32.totalorder %s135, %s149
    %p151 = scmp.eq.s32.totalorder %s20, 0
    %p152 = por %p150, %p151
    %s154 = sadd.s32 %s153, 1
    %p157 = scmp.eq.s32.totalorder %s14, 1
    %p158 = scmp.ne.s32.totalorder %s153, %s155
    %p159 = scmp.eq.s32.totalorder %s14, 0
    %p160 = por %p158, %p159
    %p161 = scmp.ne.s32.totalorder %s153, %s155
    %p162 = scmp.eq.s32.totalorder %s19, 1
    %p163 = por %p161, %p162
    %p164 = scmp.ne.s32.totalorder %s155, %s156
    %p165 = scmp.eq.s32.totalorder %s19, 0
    %p166 = por %p164, %p165
    %p167 = scmp.ne.s32.totalorder %s155, %s156
    %p168 = scmp.eq.s32.totalorder %s20, 1
    %p169 = por %p167, %p168
    %p171 = scmp.ne.s32.totalorder %s156, %s170
    %p172 = scmp.eq.s32.totalorder %s20, 0
    %p173 = por %p171, %p172
    %s174 = ssub.s32 %s14, %s21
    %p175 = scmp.eq.s32.totalorder %s174, 0
    %s177 = sadd.s32 %s176, 1
    %s178 = scalar_select %p175, %s176, %s177
    %p181 = pneg %p175
    %p182 = scmp.eq.s32.totalorder %s14, 1
    %p183 = por %p181, %p182
    %p184 = scmp.ne.s32.totalorder %s176, %s179
    %p185 = scmp.eq.s32.totalorder %s14, 0
    %p186 = por %p184, %p185
    %p187 = scmp.ne.s32.totalorder %s176, %s179
    %p188 = scmp.eq.s32.totalorder %s19, 1
    %p189 = por %p187, %p188
    %p190 = scmp.ne.s32.totalorder %s179, %s180
    %p191 = scmp.eq.s32.totalorder %s19, 0
    %p192 = por %p190, %p191
    %p193 = scmp.ne.s32.totalorder %s179, %s180
    %p194 = scmp.eq.s32.totalorder %s20, 1
    %p195 = por %p193, %p194
    %p197 = scmp.ne.s32.totalorder %s180, %s196
    %p198 = scmp.eq.s32.totalorder %s20, 0
    %p199 = por %p197, %p198
    %p200 = scmp.le.s32.totalorder 1, %s14
    %p201 = scmp.lt.s32.totalorder %s14, 3
    %p202 = pnand %p200, %p201
    %p203 = pneg %p202
    // Predicated region
    $region9: #{da_rcnn_forward.1} parent=5 // pred_check
      _
    $region10: #{da_rcnn_forward.1} parent=5 // pred_check_branch
      %205 = sbr.rel (%p202) target = $region12
    $region11: #{da_rcnn_forward.1} parent=5 // pred_region
      %s206 = ssub.s32 %s14, 1
      // Predicated region
      $region13: #{da_rcnn_forward.1} parent=11 // pred_check
        %p207 = pneg %p61
      $region14: #{da_rcnn_forward.1} parent=11 // pred_check_branch
        %209 = sbr.rel (%p207) target = $region16
      $region15: #{da_rcnn_forward.1} parent=11 // pred_region
        _
      $region16: #{da_rcnn_forward.1} parent=11 // pred_fallthru
        _
      // Predicated region
      $region17: #{da_rcnn_forward.1} parent=11 // pred_check
        %p210 = pneg %p82
      $region18: #{da_rcnn_forward.1} parent=11 // pred_check_branch
        %212 = sbr.rel (%p210) target = $region20
      $region19: #{da_rcnn_forward.1} parent=11 // pred_region
        _
      $region20: #{da_rcnn_forward.1} parent=11 // pred_fallthru
        _
      // Predicated region
      $region21: #{da_rcnn_forward.1} parent=11 // pred_check
        %p213 = pneg %p103
      $region22: #{da_rcnn_forward.1} parent=11 // pred_check_branch
        %215 = sbr.rel (%p213) target = $region24
      $region23: #{da_rcnn_forward.1} parent=11 // pred_region
        _
      $region24: #{da_rcnn_forward.1} parent=11 // pred_fallthru
        _
      // Predicated region
      $region25: #{da_rcnn_forward.1} parent=11 // pred_check
        %p216 = pneg %p124
      $region26: #{da_rcnn_forward.1} parent=11 // pred_check_branch
        %218 = sbr.rel (%p216) target = $region28
      $region27: #{da_rcnn_forward.1} parent=11 // pred_region
        _
      $region28: #{da_rcnn_forward.1} parent=11 // pred_fallthru
        _
      // Predicated region
      $region29: #{da_rcnn_forward.1} parent=11 // pred_check
        %p219 = pneg %p145
      $region30: #{da_rcnn_forward.1} parent=11 // pred_check_branch
        %221 = sbr.rel (%p219) target = $region32
      $region31: #{da_rcnn_forward.1} parent=11 // pred_region
        _
      $region32: #{da_rcnn_forward.1} parent=11 // pred_fallthru
        _
      // Predicated region
      $region33: #{da_rcnn_forward.1} parent=11 // pred_check
        %p222 = pneg %p166
      $region34: #{da_rcnn_forward.1} parent=11 // pred_check_branch
        %224 = sbr.rel (%p222) target = $region36
      $region35: #{da_rcnn_forward.1} parent=11 // pred_region
        _
      $region36: #{da_rcnn_forward.1} parent=11 // pred_fallthru
        _
    $region12: #{da_rcnn_forward.1} parent=5 // pred_fallthru
      _
    %p225 = scmp.lt.s32.totalorder %s14, 2
    // Predicated region
    $region37: #{da_rcnn_forward.1} parent=5 // pred_check
      %p226 = pneg %p225
    $region38: #{da_rcnn_forward.1} parent=5 // pred_check_branch
      %228 = sbr.rel (%p226) target = $region40
    $region39: #{da_rcnn_forward.1} parent=5 // pred_region
      // Predicated region
      $region41: #{da_rcnn_forward.1} parent=39 // pred_check
        %p229 = pneg %p34
      $region42: #{da_rcnn_forward.1} parent=39 // pred_check_branch
        %231 = sbr.rel (%p229) target = $region44
      $region43: #{da_rcnn_forward.1} parent=39 // pred_region
        %s232 = smul.u32 8, %s14
        %p233 = scmp.lt.s32.totalorder %s232, 15
        %s234 = scalar_select %p233, %s232, 15
        %s235 = smul.addr %s234, 4
        %s236 = smul.addr %s235, 8
        %s237 = scalar_lea.vmem %s0, %s236
        %s238 = smul.u32 8, %s14
      $region44: #{da_rcnn_forward.1} parent=39 // pred_fallthru
        _
    $region40: #{da_rcnn_forward.1} parent=5 // pred_fallthru
      _
    %p239 = scmp.le.s32.totalorder 1, %s14
    %p240 = scmp.lt.s32.totalorder %s14, 3
    %p241 = pnand %p239, %p240
    %p242 = pneg %p241
    // Predicated region
    $region45: #{da_rcnn_forward.1} parent=5 // pred_check
      _
    $region46: #{da_rcnn_forward.1} parent=5 // pred_check_branch
      %244 = sbr.rel (%p241) target = $region48
    $region47: #{da_rcnn_forward.1} parent=5 // pred_region
      %s245 = ssub.s32 %s14, 1
      %s246 = smul.u32 8, %s19
      %p247 = scmp.lt.s32.totalorder %s246, 15
      %s248 = scalar_select %p247, %s246, 15
      %s249 = smul.addr %s248, 4
      %s250 = smul.addr %s249, 8
      %s251 = scalar_lea.vmem %s0, %s250
      %p252 = pneg %p40
      %p253 = pneg %p37
      %p254 = pneg %p61
      %p255 = pneg %p58
      %p256 = pneg %p82
      %p257 = pneg %p79
      %p258 = pneg %p103
      %p259 = pneg %p100
      %p260 = pneg %p124
      %p261 = pneg %p121
      %p262 = pneg %p145
      %p263 = pneg %p142
      %p264 = pneg %p166
      %p265 = pneg %p163
      %p266 = pneg %p192
      %p267 = pneg %p189
      %s268 = smul.u32 8, %s19
      %p269 = scmp.lt.s32.totalorder %s268, 15
      %s270 = scalar_select %p269, %s268, 15
      %s271 = smul.addr %s270, 8
      %s272 = scalar_lea.vmem %s7, %s271
      %s273 = smul.u32 8, %s19
      %p274 = scmp.lt.s32.totalorder %s273, 15
      %s275 = scalar_select %p274, %s273, 15
      %s276 = smul.addr %s275, 4
      %s277 = smul.addr %s276, 8
      %s278 = scalar_lea.vmem %s0, %s277
      %s279 = smul.u32 8, %s19
      %s280 = smul.u32 8, %s19
      %p281 = scmp.lt.s32.totalorder %s280, 15
      %s282 = scalar_select %p281, %s280, 15
      %s283 = smul.addr %s282, 8
      %s284 = scalar_lea.vmem %s7, %s283
      %s285 = smul.u32 8, %s19
      %v286 = vld [vmem:[%s278] sm:$0xff]
      %v287 = vld [vmem:[%s278 + $0x8] sm:$0xff]
      %v288 = vld [vmem:[%s278 + $0x10] sm:$0xff]
      %v289 = vld [vmem:[%s278 + $0x18] sm:$0xff]
      %v290 = vld [vmem:[%s278 + $0x20] sm:$0xff]
      %v291 = vld [vmem:[%s278 + $0x28] sm:$0xff]
      %v292 = vld [vmem:[%s278 + $0x30] sm:$0xff]
      %v293 = vld [vmem:[%s278 + $0x38] sm:$0xff]
      %v294 = vld [vmem:[%s278 + $0x40] sm:$0xff]
      %v295 = vld [vmem:[%s278 + $0x48] sm:$0xff]
      %v296 = vld [vmem:[%s278 + $0x50] sm:$0xff]
      %v297 = vld [vmem:[%s278 + $0x58] sm:$0xff]
      %v298 = vld [vmem:[%s278 + $0x60] sm:$0xff]
      %v299 = vld [vmem:[%s278 + $0x68] sm:$0xff]
      %v300 = vld [vmem:[%s278 + $0x70] sm:$0xff]
      %v301 = vld [vmem:[%s278 + $0x78] sm:$0xff]
      %v302 = vld [vmem:[%s278 + $0x80] sm:$0xff]
      %v303 = vld [vmem:[%s278 + $0x88] sm:$0xff]
      %v304 = vld [vmem:[%s278 + $0x90] sm:$0xff]
      %v305 = vld [vmem:[%s278 + $0x98] sm:$0xff]
      %v306 = vld [vmem:[%s278 + $0xa0] sm:$0xff]
      %v307 = vld [vmem:[%s278 + $0xa8] sm:$0xff]
      %v308 = vld [vmem:[%s278 + $0xb0] sm:$0xff]
      %v309 = vld [vmem:[%s278 + $0xb8] sm:$0xff]
      %v310 = vld [vmem:[%s278 + $0xc0] sm:$0xff]
      %v311 = vld [vmem:[%s278 + $0xc8] sm:$0xff]
      %v312 = vld [vmem:[%s278 + $0xd0] sm:$0xff]
      %v313 = vld [vmem:[%s278 + $0xd8] sm:$0xff]
      %v314 = vld [vmem:[%s278 + $0xe0] sm:$0xff]
      %v315 = vld [vmem:[%s278 + $0xe8] sm:$0xff]
      %v316 = vld [vmem:[%s278 + $0xf0] sm:$0xff]
      %v317 = vld [vmem:[%s278 + $0xf8] sm:$0xff]
      %v318 = vpack.c.bf16 %v290, %v286
      %v319 = vpack.c.bf16 %v291, %v287
      %v320 = vpack.c.bf16 %v292, %v288
      %v321 = vpack.c.bf16 %v293, %v289
      %v322 = vpack.c.bf16 %v298, %v294
      %v323 = vpack.c.bf16 %v299, %v295
      %v324 = vpack.c.bf16 %v300, %v296
      %v325 = vpack.c.bf16 %v301, %v297
      %v326 = vpack.c.bf16 %v306, %v302
      %v327 = vpack.c.bf16 %v307, %v303
      %v328 = vpack.c.bf16 %v308, %v304
      %v329 = vpack.c.bf16 %v309, %v305
      %v330 = vpack.c.bf16 %v314, %v310
      %v331 = vpack.c.bf16 %v315, %v311
      %v332 = vpack.c.bf16 %v316, %v312
      %v333 = vpack.c.bf16 %v317, %v313
      %v334 = vld [vmem:[%s1] sm:$0xff]
      %v335 = vld [vmem:[%s1 + $0x8] sm:$0xff]
      %v336 = vld [vmem:[%s1 + $0x10] sm:$0xff]
      %v337 = vld [vmem:[%s1 + $0x18] sm:$0xff]
      %v338 = vld [vmem:[%s1 + $0x20] sm:$0xff]
      %v339 = vld [vmem:[%s1 + $0x28] sm:$0xff]
      %v340 = vld [vmem:[%s1 + $0x30] sm:$0xff]
      %v341 = vld [vmem:[%s1 + $0x38] sm:$0xff]
      %v342 = vld [vmem:[%s1 + $0x40] sm:$0xff]
      %v343 = vld [vmem:[%s1 + $0x48] sm:$0xff]
      %v344 = vld [vmem:[%s1 + $0x50] sm:$0xff]
      %v345 = vld [vmem:[%s1 + $0x58] sm:$0xff]
      %v346 = vld [vmem:[%s1 + $0x60] sm:$0xff]
      %v347 = vld [vmem:[%s1 + $0x68] sm:$0xff]
      %v348 = vld [vmem:[%s1 + $0x70] sm:$0xff]
      %v349 = vld [vmem:[%s1 + $0x78] sm:$0xff]
      %v350 = vld [vmem:[%s1 + $0x80] sm:$0xff]
      %v351 = vld [vmem:[%s1 + $0x88] sm:$0xff]
      %v352 = vld [vmem:[%s1 + $0x90] sm:$0xff]
      %v353 = vld [vmem:[%s1 + $0x98] sm:$0xff]
      %v354 = vld [vmem:[%s1 + $0xa0] sm:$0xff]
      %v355 = vld [vmem:[%s1 + $0xa8] sm:$0xff]
      %v356 = vld [vmem:[%s1 + $0xb0] sm:$0xff]
      %v357 = vld [vmem:[%s1 + $0xb8] sm:$0xff]
      %v358 = vld [vmem:[%s1 + $0xc0] sm:$0xff]
      %v359 = vld [vmem:[%s1 + $0xc8] sm:$0xff]
      %v360 = vld [vmem:[%s1 + $0xd0] sm:$0xff]
      %v361 = vld [vmem:[%s1 + $0xd8] sm:$0xff]
      %v362 = vld [vmem:[%s1 + $0xe0] sm:$0xff]
      %v363 = vld [vmem:[%s1 + $0xe8] sm:$0xff]
      %v364 = vld [vmem:[%s1 + $0xf0] sm:$0xff]
      %v365 = vld [vmem:[%s1 + $0xf8] sm:$0xff]
      %v366 = vld [vmem:[%s1 + $0x100] sm:$0xff]
      %v367 = vld [vmem:[%s1 + $0x108] sm:$0xff]
      %v368 = vld [vmem:[%s1 + $0x110] sm:$0xff]
      %v369 = vld [vmem:[%s1 + $0x118] sm:$0xff]
      %v370 = vld [vmem:[%s1 + $0x120] sm:$0xff]
      %v371 = vld [vmem:[%s1 + $0x128] sm:$0xff]
      %v372 = vld [vmem:[%s1 + $0x130] sm:$0xff]
      %v373 = vld [vmem:[%s1 + $0x138] sm:$0xff]
      %v374 = vld [vmem:[%s1 + $0x140] sm:$0xff]
      %v375 = vld [vmem:[%s1 + $0x148] sm:$0xff]
      %v376 = vld [vmem:[%s1 + $0x150] sm:$0xff]
      %v377 = vld [vmem:[%s1 + $0x158] sm:$0xff]
      %v378 = vld [vmem:[%s1 + $0x160] sm:$0xff]
      %v379 = vld [vmem:[%s1 + $0x168] sm:$0xff]
      %v380 = vld [vmem:[%s1 + $0x170] sm:$0xff]
      %v381 = vld [vmem:[%s1 + $0x178] sm:$0xff]
      %v382 = vld [vmem:[%s1 + $0x180] sm:$0xff]
      %v383 = vld [vmem:[%s1 + $0x188] sm:$0xff]
      %v384 = vld [vmem:[%s1 + $0x190] sm:$0xff]
      %v385 = vld [vmem:[%s1 + $0x198] sm:$0xff]
      %v386 = vld [vmem:[%s1 + $0x1a0] sm:$0xff]
      %v387 = vld [vmem:[%s1 + $0x1a8] sm:$0xff]
      %v388 = vld [vmem:[%s1 + $0x1b0] sm:$0xff]
      %v389 = vld [vmem:[%s1 + $0x1b8] sm:$0xff]
      %v390 = vld [vmem:[%s1 + $0x1c0] sm:$0xff]
      %v391 = vld [vmem:[%s1 + $0x1c8] sm:$0xff]
      %v392 = vld [vmem:[%s1 + $0x1d0] sm:$0xff]
      %v393 = vld [vmem:[%s1 + $0x1d8] sm:$0xff]
      %v394 = vld [vmem:[%s1 + $0x1e0] sm:$0xff]
      %v395 = vld [vmem:[%s1 + $0x1e8] sm:$0xff]
      %v396 = vld [vmem:[%s1 + $0x1f0] sm:$0xff]
      %v397 = vld [vmem:[%s1 + $0x1f8] sm:$0xff]
      %v398 = vld [vmem:[%s2] sm:$0x3]
      %v400 = vlaneseq
      %v401 = vshrl.u32 %v400, 7
      %v402 = vsub.s32 0, %v401
      %v403 = vrot.slane %v398, %v402
      %v404 = vlaneseq
      %v405 = vshrl.u32 %v404, 7
      %v406 = vsub.s32 1, %v405
      %v407 = vrot.slane %v398, %v406
      %v474 = vunpack.c.l.b16 %v334
      %v475 = vunpack.c.h.b16 %v334
      %v476 = vunpack.c.l.b16 %v335
      %v477 = vunpack.c.h.b16 %v335
      %v478 = vunpack.c.l.b16 %v336
      %v479 = vunpack.c.h.b16 %v336
      %v480 = vunpack.c.l.b16 %v337
      %v481 = vunpack.c.h.b16 %v337
      %v482 = vunpack.c.l.b16 %v338
      %v483 = vunpack.c.h.b16 %v338
      %v484 = vunpack.c.l.b16 %v339
      %v485 = vunpack.c.h.b16 %v339
      %v486 = vunpack.c.l.b16 %v340
      %v487 = vunpack.c.h.b16 %v340
      %v488 = vunpack.c.l.b16 %v341
      %v489 = vunpack.c.h.b16 %v341
      %v490 = vunpack.c.l.b16 %v342
      %v491 = vunpack.c.h.b16 %v342
      %v492 = vunpack.c.l.b16 %v343
      %v493 = vunpack.c.h.b16 %v343
      %v494 = vunpack.c.l.b16 %v344
      %v495 = vunpack.c.h.b16 %v344
      %v496 = vunpack.c.l.b16 %v345
      %v497 = vunpack.c.h.b16 %v345
      %v498 = vunpack.c.l.b16 %v346
      %v499 = vunpack.c.h.b16 %v346
      %v500 = vunpack.c.l.b16 %v347
      %v501 = vunpack.c.h.b16 %v347
      %v502 = vunpack.c.l.b16 %v348
      %v503 = vunpack.c.h.b16 %v348
      %v504 = vunpack.c.l.b16 %v349
      %v505 = vunpack.c.h.b16 %v349
      %v506 = vunpack.c.l.b16 %v350
      %v507 = vunpack.c.h.b16 %v350
      %v508 = vunpack.c.l.b16 %v351
      %v509 = vunpack.c.h.b16 %v351
      %v510 = vunpack.c.l.b16 %v352
      %v511 = vunpack.c.h.b16 %v352
      %v512 = vunpack.c.l.b16 %v353
      %v513 = vunpack.c.h.b16 %v353
      %v514 = vunpack.c.l.b16 %v354
      %v515 = vunpack.c.h.b16 %v354
      %v516 = vunpack.c.l.b16 %v355
      %v517 = vunpack.c.h.b16 %v355
      %v518 = vunpack.c.l.b16 %v356
      %v519 = vunpack.c.h.b16 %v356
      %v520 = vunpack.c.l.b16 %v357
      %v521 = vunpack.c.h.b16 %v357
      %v522 = vunpack.c.l.b16 %v358
      %v523 = vunpack.c.h.b16 %v358
      %v524 = vunpack.c.l.b16 %v359
      %v525 = vunpack.c.h.b16 %v359
      %v526 = vunpack.c.l.b16 %v360
      %v527 = vunpack.c.h.b16 %v360
      %v528 = vunpack.c.l.b16 %v361
      %v529 = vunpack.c.h.b16 %v361
      %v530 = vunpack.c.l.b16 %v362
      %v531 = vunpack.c.h.b16 %v362
      %v532 = vunpack.c.l.b16 %v363
      %v533 = vunpack.c.h.b16 %v363
      %v534 = vunpack.c.l.b16 %v364
      %v535 = vunpack.c.h.b16 %v364
      %v536 = vunpack.c.l.b16 %v365
      %v537 = vunpack.c.h.b16 %v365
      %v538 = vunpack.c.l.b16 %v366
      %v539 = vunpack.c.h.b16 %v366
      %v540 = vunpack.c.l.b16 %v367
      %v541 = vunpack.c.h.b16 %v367
      %v542 = vunpack.c.l.b16 %v368
      %v543 = vunpack.c.h.b16 %v368
      %v544 = vunpack.c.l.b16 %v369
      %v545 = vunpack.c.h.b16 %v369
      %v546 = vunpack.c.l.b16 %v370
      %v547 = vunpack.c.h.b16 %v370
      %v548 = vunpack.c.l.b16 %v371
      %v549 = vunpack.c.h.b16 %v371
      %v550 = vunpack.c.l.b16 %v372
      %v551 = vunpack.c.h.b16 %v372
      %v552 = vunpack.c.l.b16 %v373
      %v553 = vunpack.c.h.b16 %v373
      %v554 = vunpack.c.l.b16 %v374
      %v555 = vunpack.c.h.b16 %v374
      %v556 = vunpack.c.l.b16 %v375
      %v557 = vunpack.c.h.b16 %v375
      %v558 = vunpack.c.l.b16 %v376
      %v559 = vunpack.c.h.b16 %v376
      %v560 = vunpack.c.l.b16 %v377
      %v561 = vunpack.c.h.b16 %v377
      %v562 = vunpack.c.l.b16 %v378
      %v563 = vunpack.c.h.b16 %v378
      %v564 = vunpack.c.l.b16 %v379
      %v565 = vunpack.c.h.b16 %v379
      %v566 = vunpack.c.l.b16 %v380
      %v567 = vunpack.c.h.b16 %v380
      %v568 = vunpack.c.l.b16 %v381
      %v569 = vunpack.c.h.b16 %v381
      %v570 = vunpack.c.l.b16 %v382
      %v571 = vunpack.c.h.b16 %v382
      %v572 = vunpack.c.l.b16 %v383
      %v573 = vunpack.c.h.b16 %v383
      %v574 = vunpack.c.l.b16 %v384
      %v575 = vunpack.c.h.b16 %v384
      %v576 = vunpack.c.l.b16 %v385
      %v577 = vunpack.c.h.b16 %v385
      %v578 = vunpack.c.l.b16 %v386
      %v579 = vunpack.c.h.b16 %v386
      %v580 = vunpack.c.l.b16 %v387
      %v581 = vunpack.c.h.b16 %v387
      %v582 = vunpack.c.l.b16 %v388
      %v583 = vunpack.c.h.b16 %v388
      %v584 = vunpack.c.l.b16 %v389
      %v585 = vunpack.c.h.b16 %v389
      %v586 = vunpack.c.l.b16 %v390
      %v587 = vunpack.c.h.b16 %v390
      %v588 = vunpack.c.l.b16 %v391
      %v589 = vunpack.c.h.b16 %v391
      %v590 = vunpack.c.l.b16 %v392
      %v591 = vunpack.c.h.b16 %v392
      %v592 = vunpack.c.l.b16 %v393
      %v593 = vunpack.c.h.b16 %v393
      %v594 = vunpack.c.l.b16 %v394
      %v595 = vunpack.c.h.b16 %v394
      %v596 = vunpack.c.l.b16 %v395
      %v597 = vunpack.c.h.b16 %v395
      %v598 = vunpack.c.l.b16 %v396
      %v599 = vunpack.c.h.b16 %v396
      %v600 = vunpack.c.l.b16 %v397
      %v601 = vunpack.c.h.b16 %v397
      %v602 = vpack.c.b16 %v476, %v474
      %v603 = vpack.c.b16 %v477, %v475
      %v604 = vpack.c.b16 %v480, %v478
      %v605 = vpack.c.b16 %v481, %v479
      %v606 = vpack.c.b16 %v484, %v482
      %v607 = vpack.c.b16 %v485, %v483
      %v608 = vpack.c.b16 %v488, %v486
      %v609 = vpack.c.b16 %v489, %v487
      %v610 = vpack.c.b16 %v492, %v490
      %v611 = vpack.c.b16 %v493, %v491
      %v612 = vpack.c.b16 %v496, %v494
      %v613 = vpack.c.b16 %v497, %v495
      %v614 = vpack.c.b16 %v500, %v498
      %v615 = vpack.c.b16 %v501, %v499
      %v616 = vpack.c.b16 %v504, %v502
      %v617 = vpack.c.b16 %v505, %v503
      %v618 = vpack.c.b16 %v508, %v506
      %v619 = vpack.c.b16 %v509, %v507
      %v620 = vpack.c.b16 %v512, %v510
      %v621 = vpack.c.b16 %v513, %v511
      %v622 = vpack.c.b16 %v516, %v514
      %v623 = vpack.c.b16 %v517, %v515
      %v624 = vpack.c.b16 %v520, %v518
      %v625 = vpack.c.b16 %v521, %v519
      %v626 = vpack.c.b16 %v524, %v522
      %v627 = vpack.c.b16 %v525, %v523
      %v628 = vpack.c.b16 %v528, %v526
      %v629 = vpack.c.b16 %v529, %v527
      %v630 = vpack.c.b16 %v532, %v530
      %v631 = vpack.c.b16 %v533, %v531
      %v632 = vpack.c.b16 %v536, %v534
      %v633 = vpack.c.b16 %v537, %v535
      %v634 = vpack.c.b16 %v540, %v538
      %v635 = vpack.c.b16 %v541, %v539
      %v636 = vpack.c.b16 %v544, %v542
      %v637 = vpack.c.b16 %v545, %v543
      %v638 = vpack.c.b16 %v548, %v546
      %v639 = vpack.c.b16 %v549, %v547
      %v640 = vpack.c.b16 %v552, %v550
      %v641 = vpack.c.b16 %v553, %v551
      %v642 = vpack.c.b16 %v556, %v554
      %v643 = vpack.c.b16 %v557, %v555
      %v644 = vpack.c.b16 %v560, %v558
      %v645 = vpack.c.b16 %v561, %v559
      %v646 = vpack.c.b16 %v564, %v562
      %v647 = vpack.c.b16 %v565, %v563
      %v648 = vpack.c.b16 %v568, %v566
      %v649 = vpack.c.b16 %v569, %v567
      %v650 = vpack.c.b16 %v572, %v570
      %v651 = vpack.c.b16 %v573, %v571
      %v652 = vpack.c.b16 %v576, %v574
      %v653 = vpack.c.b16 %v577, %v575
      %v654 = vpack.c.b16 %v580, %v578
      %v655 = vpack.c.b16 %v581, %v579
      %v656 = vpack.c.b16 %v584, %v582
      %v657 = vpack.c.b16 %v585, %v583
      %v658 = vpack.c.b16 %v588, %v586
      %v659 = vpack.c.b16 %v589, %v587
      %v660 = vpack.c.b16 %v592, %v590
      %v661 = vpack.c.b16 %v593, %v591
      %v662 = vpack.c.b16 %v596, %v594
      %v663 = vpack.c.b16 %v597, %v595
      %v664 = vpack.c.b16 %v600, %v598
      %v665 = vpack.c.b16 %v601, %v599
      %730 = vmatprep.subr.bf16.mxu0 %v603
      %731 = vmatpush1.bf16.msra.mxu0 %v602
      %732 = vmatprep.subr.bf16.mxu0 %v605
      %733 = vmatpush1.bf16.msra.mxu0 %v604
      %734 = vmatprep.subr.bf16.mxu0 %v607
      %735 = vmatpush1.bf16.msra.mxu0 %v606
      %736 = vmatprep.subr.bf16.mxu0 %v609
      %737 = vmatpush1.bf16.msra.mxu0 %v608
      %738 = vmatprep.subr.bf16.mxu0 %v611
      %739 = vmatpush1.bf16.msra.mxu0 %v610
      %740 = vmatprep.subr.bf16.mxu0 %v613
      %741 = vmatpush1.bf16.msra.mxu0 %v612
      %742 = vmatprep.subr.bf16.mxu0 %v615
      %743 = vmatpush1.bf16.msra.mxu0 %v614
      %744 = vmatprep.subr.bf16.mxu0 %v617
      %745 = vmatpush1.bf16.msra.mxu0 %v616
      %746 = vmatprep.subr.bf16.mxu0 %v619
      %747 = vmatpush1.bf16.msra.mxu0 %v618
      %748 = vmatprep.subr.bf16.mxu0 %v621
      %749 = vmatpush1.bf16.msra.mxu0 %v620
      %750 = vmatprep.subr.bf16.mxu0 %v623
      %751 = vmatpush1.bf16.msra.mxu0 %v622
      %752 = vmatprep.subr.bf16.mxu0 %v625
      %753 = vmatpush1.bf16.msra.mxu0 %v624
      %754 = vmatprep.subr.bf16.mxu0 %v627
      %755 = vmatpush1.bf16.msra.mxu0 %v626
      %756 = vmatprep.subr.bf16.mxu0 %v629
      %757 = vmatpush1.bf16.msra.mxu0 %v628
      %758 = vmatprep.subr.bf16.mxu0 %v631
      %759 = vmatpush1.bf16.msra.mxu0 %v630
      %760 = vmatprep.subr.bf16.mxu0 %v633
      %761 = vmatpush1.bf16.msra.mxu0 %v632
      %762 = vmatprep.mubr.bf16.mxu0 %v319
      %763 = vmatmul.mubr.bf16.gmra.mrb[0].mxu0 %v318
      %v764 = vpop.f32.mrb[0].mxu0
      %v765 = vadd.f32 %v403, %v764
      %v766 = vpop.f32.mrb[0].mxu0
      %v767 = vadd.f32 %v407, %v766
      %v768 = vpop.f32.mrb[0].mxu0
      %v769 = vadd.f32 %v403, %v768
      %v770 = vpop.f32.mrb[0].mxu0
      %v771 = vadd.f32 %v407, %v770
      %772 = vmatprep.mubr.bf16.mxu0 %v323
      %773 = vmatmul.mubr.bf16.gmra.mrb[0].mxu0 %v322
      %v774 = vpop.f32.mrb[0].mxu0
      %v775 = vadd.f32 %v403, %v774
      %v776 = vpop.f32.mrb[0].mxu0
      %v777 = vadd.f32 %v407, %v776
      %v778 = vpop.f32.mrb[0].mxu0
      %v779 = vadd.f32 %v403, %v778
      %v780 = vpop.f32.mrb[0].mxu0
      %v781 = vadd.f32 %v407, %v780
      %782 = vmatprep.mubr.bf16.mxu0 %v327
      %783 = vmatmul.mubr.bf16.gmra.mrb[0].mxu0 %v326
      %v784 = vpop.f32.mrb[0].mxu0
      %v785 = vadd.f32 %v403, %v784
      %v786 = vpop.f32.mrb[0].mxu0
      %v787 = vadd.f32 %v407, %v786
      %v788 = vpop.f32.mrb[0].mxu0
      %v789 = vadd.f32 %v403, %v788
      %v790 = vpop.f32.mrb[0].mxu0
      %v791 = vadd.f32 %v407, %v790
      %792 = vmatprep.mubr.bf16.mxu0 %v331
      %793 = vmatmul.mubr.bf16.gmra.mrb[0].mxu0 %v330
      %v794 = vpop.f32.mrb[0].mxu0
      %v795 = vadd.f32 %v403, %v794
      %v796 = vpop.f32.mrb[0].mxu0
      %v797 = vadd.f32 %v407, %v796
      %v798 = vpop.f32.mrb[0].mxu0
      %v799 = vadd.f32 %v403, %v798
      %v800 = vpop.f32.mrb[0].mxu0
      %v801 = vadd.f32 %v407, %v800
      %802 = vdwg.mxu0
      %803 = vmatprep.subr.bf16.mxu0 %v635
      %804 = vmatpush1.bf16.msra.mxu0 %v634
      %805 = vmatprep.subr.bf16.mxu0 %v637
      %806 = vmatpush1.bf16.msra.mxu0 %v636
      %807 = vmatprep.subr.bf16.mxu0 %v639
      %808 = vmatpush1.bf16.msra.mxu0 %v638
      %809 = vmatprep.subr.bf16.mxu0 %v641
      %810 = vmatpush1.bf16.msra.mxu0 %v640
      %811 = vmatprep.subr.bf16.mxu0 %v643
      %812 = vmatpush1.bf16.msra.mxu0 %v642
      %813 = vmatprep.subr.bf16.mxu0 %v645
      %814 = vmatpush1.bf16.msra.mxu0 %v644
      %815 = vmatprep.subr.bf16.mxu0 %v647
      %816 = vmatpush1.bf16.msra.mxu0 %v646
      %817 = vmatprep.subr.bf16.mxu0 %v649
      %818 = vmatpush1.bf16.msra.mxu0 %v648
      %819 = vmatprep.subr.bf16.mxu0 %v651
      %820 = vmatpush1.bf16.msra.mxu0 %v650
      %821 = vmatprep.subr.bf16.mxu0 %v653
      %822 = vmatpush1.bf16.msra.mxu0 %v652
      %823 = vmatprep.subr.bf16.mxu0 %v655
      %824 = vmatpush1.bf16.msra.mxu0 %v654
      %825 = vmatprep.subr.bf16.mxu0 %v657
      %826 = vmatpush1.bf16.msra.mxu0 %v656
      %827 = vmatprep.subr.bf16.mxu0 %v659
      %828 = vmatpush1.bf16.msra.mxu0 %v658
      %829 = vmatprep.subr.bf16.mxu0 %v661
      %830 = vmatpush1.bf16.msra.mxu0 %v660
      %831 = vmatprep.subr.bf16.mxu0 %v663
      %832 = vmatpush1.bf16.msra.mxu0 %v662
      %833 = vmatprep.subr.bf16.mxu0 %v665
      %834 = vmatpush1.bf16.msra.mxu0 %v664
      %835 = vmatprep.mubr.bf16.mxu0 %v321
      %836 = vmatmul.mubr.bf16.gmra.mrb[0].mxu0 %v320
      %v837 = vpop.f32.mrb[0].mxu0
      %v838 = vadd.f32 %v765, %v837
      %v839 = vpop.f32.mrb[0].mxu0
      %v840 = vadd.f32 %v767, %v839
      %v841 = vpop.f32.mrb[0].mxu0
      %v842 = vadd.f32 %v769, %v841
      %v843 = vpop.f32.mrb[0].mxu0
      %v844 = vadd.f32 %v771, %v843
      %845 = vmatprep.mubr.bf16.mxu0 %v325
      %846 = vmatmul.mubr.bf16.gmra.mrb[0].mxu0 %v324
      %v847 = vpop.f32.mrb[0].mxu0
      %v848 = vadd.f32 %v775, %v847
      %v849 = vpop.f32.mrb[0].mxu0
      %v850 = vadd.f32 %v777, %v849
      %v851 = vpop.f32.mrb[0].mxu0
      %v852 = vadd.f32 %v779, %v851
      %v853 = vpop.f32.mrb[0].mxu0
      %v854 = vadd.f32 %v781, %v853
      %855 = vmatprep.mubr.bf16.mxu0 %v329
      %856 = vmatmul.mubr.bf16.gmra.mrb[0].mxu0 %v328
      %v857 = vpop.f32.mrb[0].mxu0
      %v858 = vadd.f32 %v785, %v857
      %v859 = vpop.f32.mrb[0].mxu0
      %v860 = vadd.f32 %v787, %v859
      %v861 = vpop.f32.mrb[0].mxu0
      %v862 = vadd.f32 %v789, %v861
      %v863 = vpop.f32.mrb[0].mxu0
      %v864 = vadd.f32 %v791, %v863
      %865 = vmatprep.mubr.bf16.mxu0 %v333
      %866 = vmatmul.mubr.bf16.gmra.mrb[0].mxu0 %v332
      %v867 = vpop.f32.mrb[0].mxu0
      %v868 = vadd.f32 %v795, %v867
      %v869 = vpop.f32.mrb[0].mxu0
      %v870 = vadd.f32 %v797, %v869
      %v871 = vpop.f32.mrb[0].mxu0
      %v872 = vadd.f32 %v799, %v871
      %v873 = vpop.f32.mrb[0].mxu0
      %v874 = vadd.f32 %v801, %v873
      %875 = vdwg.mxu0
      %v876 = vmax.f32 %v838, 0.0
      %v877 = vmax.f32 %v840, 0.0
      %v878 = vmax.f32 %v842, 0.0
      %v879 = vmax.f32 %v844, 0.0
      %v880 = vmax.f32 %v848, 0.0
      %v881 = vmax.f32 %v850, 0.0
      %v882 = vmax.f32 %v852, 0.0
      %v883 = vmax.f32 %v854, 0.0
      %v884 = vmax.f32 %v858, 0.0
      %v885 = vmax.f32 %v860, 0.0
      %v886 = vmax.f32 %v862, 0.0
      %v887 = vmax.f32 %v864, 0.0
      %v888 = vmax.f32 %v868, 0.0
      %v889 = vmax.f32 %v870, 0.0
      %v890 = vmax.f32 %v872, 0.0
      %v891 = vmax.f32 %v874, 0.0
      %v892 = vpack.c.bf16 %v878, %v876
      %v893 = vpack.c.bf16 %v879, %v877
      %v894 = vpack.c.bf16 %v882, %v880
      %v895 = vpack.c.bf16 %v883, %v881
      %v896 = vpack.c.bf16 %v886, %v884
      %v897 = vpack.c.bf16 %v887, %v885
      %v898 = vpack.c.bf16 %v890, %v888
      %v899 = vpack.c.bf16 %v891, %v889
      %v900 = vld [vmem:[%s3] sm:$0xff]
      %v901 = vld [vmem:[%s3 + $0x8] sm:$0xff]
      %v902 = vld [vmem:[%s3 + $0x10] sm:$0xff]
      %v903 = vld [vmem:[%s3 + $0x18] sm:$0xff]
      %v904 = vld [vmem:[%s3 + $0x20] sm:$0xff]
      %v905 = vld [vmem:[%s3 + $0x28] sm:$0xff]
      %v906 = vld [vmem:[%s3 + $0x30] sm:$0xff]
      %v907 = vld [vmem:[%s3 + $0x38] sm:$0xff]
      %v908 = vld [vmem:[%s3 + $0x40] sm:$0xff]
      %v909 = vld [vmem:[%s3 + $0x48] sm:$0xff]
      %v910 = vld [vmem:[%s3 + $0x50] sm:$0xff]
      %v911 = vld [vmem:[%s3 + $0x58] sm:$0xff]
      %v912 = vld [vmem:[%s3 + $0x60] sm:$0xff]
      %v913 = vld [vmem:[%s3 + $0x68] sm:$0xff]
      %v914 = vld [vmem:[%s3 + $0x70] sm:$0xff]
      %v915 = vld [vmem:[%s3 + $0x78] sm:$0xff]
      %v916 = vld [vmem:[%s3 + $0x80] sm:$0xff]
      %v917 = vld [vmem:[%s3 + $0x88] sm:$0xff]
      %v918 = vld [vmem:[%s3 + $0x90] sm:$0xff]
      %v919 = vld [vmem:[%s3 + $0x98] sm:$0xff]
      %v920 = vld [vmem:[%s3 + $0xa0] sm:$0xff]
      %v921 = vld [vmem:[%s3 + $0xa8] sm:$0xff]
      %v922 = vld [vmem:[%s3 + $0xb0] sm:$0xff]
      %v923 = vld [vmem:[%s3 + $0xb8] sm:$0xff]
      %v924 = vld [vmem:[%s3 + $0xc0] sm:$0xff]
      %v925 = vld [vmem:[%s3 + $0xc8] sm:$0xff]
      %v926 = vld [vmem:[%s3 + $0xd0] sm:$0xff]
      %v927 = vld [vmem:[%s3 + $0xd8] sm:$0xff]
      %v928 = vld [vmem:[%s3 + $0xe0] sm:$0xff]
      %v929 = vld [vmem:[%s3 + $0xe8] sm:$0xff]
      %v930 = vld [vmem:[%s3 + $0xf0] sm:$0xff]
      %v931 = vld [vmem:[%s3 + $0xf8] sm:$0xff]
      %v932 = vld [vmem:[%s4] sm:$0x3]
      %v934 = vlaneseq
      %v935 = vshrl.u32 %v934, 7
      %v936 = vsub.s32 0, %v935
      %v937 = vrot.slane %v932, %v936
      %v938 = vlaneseq
      %v939 = vshrl.u32 %v938, 7
      %v940 = vsub.s32 1, %v939
      %v941 = vrot.slane %v932, %v940
      %v976 = vunpack.c.l.b16 %v900
      %v977 = vunpack.c.h.b16 %v900
      %v978 = vunpack.c.l.b16 %v901
      %v979 = vunpack.c.h.b16 %v901
      %v980 = vunpack.c.l.b16 %v902
      %v981 = vunpack.c.h.b16 %v902
      %v982 = vunpack.c.l.b16 %v903
      %v983 = vunpack.c.h.b16 %v903
      %v984 = vunpack.c.l.b16 %v904
      %v985 = vunpack.c.h.b16 %v904
      %v986 = vunpack.c.l.b16 %v905
      %v987 = vunpack.c.h.b16 %v905
      %v988 = vunpack.c.l.b16 %v906
      %v989 = vunpack.c.h.b16 %v906
      %v990 = vunpack.c.l.b16 %v907
      %v991 = vunpack.c.h.b16 %v907
      %v992 = vunpack.c.l.b16 %v908
      %v993 = vunpack.c.h.b16 %v908
      %v994 = vunpack.c.l.b16 %v909
      %v995 = vunpack.c.h.b16 %v909
      %v996 = vunpack.c.l.b16 %v910
      %v997 = vunpack.c.h.b16 %v910
      %v998 = vunpack.c.l.b16 %v911
      %v999 = vunpack.c.h.b16 %v911
      %v1000 = vunpack.c.l.b16 %v912
      %v1001 = vunpack.c.h.b16 %v912
      %v1002 = vunpack.c.l.b16 %v913
      %v1003 = vunpack.c.h.b16 %v913
      %v1004 = vunpack.c.l.b16 %v914
      %v1005 = vunpack.c.h.b16 %v914
      %v1006 = vunpack.c.l.b16 %v915
      %v1007 = vunpack.c.h.b16 %v915
      %v1008 = vunpack.c.l.b16 %v916
      %v1009 = vunpack.c.h.b16 %v916
      %v1010 = vunpack.c.l.b16 %v917
      %v1011 = vunpack.c.h.b16 %v917
      %v1012 = vunpack.c.l.b16 %v918
      %v1013 = vunpack.c.h.b16 %v918
      %v1014 = vunpack.c.l.b16 %v919
      %v1015 = vunpack.c.h.b16 %v919
      %v1016 = vunpack.c.l.b16 %v920
      %v1017 = vunpack.c.h.b16 %v920
      %v1018 = vunpack.c.l.b16 %v921
      %v1019 = vunpack.c.h.b16 %v921
      %v1020 = vunpack.c.l.b16 %v922
      %v1021 = vunpack.c.h.b16 %v922
      %v1022 = vunpack.c.l.b16 %v923
      %v1023 = vunpack.c.h.b16 %v923
      %v1024 = vunpack.c.l.b16 %v924
      %v1025 = vunpack.c.h.b16 %v924
      %v1026 = vunpack.c.l.b16 %v925
      %v1027 = vunpack.c.h.b16 %v925
      %v1028 = vunpack.c.l.b16 %v926
      %v1029 = vunpack.c.h.b16 %v926
      %v1030 = vunpack.c.l.b16 %v927
      %v1031 = vunpack.c.h.b16 %v927
      %v1032 = vunpack.c.l.b16 %v928
      %v1033 = vunpack.c.h.b16 %v928
      %v1034 = vunpack.c.l.b16 %v929
      %v1035 = vunpack.c.h.b16 %v929
      %v1036 = vunpack.c.l.b16 %v930
      %v1037 = vunpack.c.h.b16 %v930
      %v1038 = vunpack.c.l.b16 %v931
      %v1039 = vunpack.c.h.b16 %v931
      %v1040 = vpack.c.b16 %v978, %v976
      %v1041 = vpack.c.b16 %v979, %v977
      %v1042 = vpack.c.b16 %v982, %v980
      %v1043 = vpack.c.b16 %v983, %v981
      %v1044 = vpack.c.b16 %v986, %v984
      %v1045 = vpack.c.b16 %v987, %v985
      %v1046 = vpack.c.b16 %v990, %v988
      %v1047 = vpack.c.b16 %v991, %v989
      %v1048 = vpack.c.b16 %v994, %v992
      %v1049 = vpack.c.b16 %v995, %v993
      %v1050 = vpack.c.b16 %v998, %v996
      %v1051 = vpack.c.b16 %v999, %v997
      %v1052 = vpack.c.b16 %v1002, %v1000
      %v1053 = vpack.c.b16 %v1003, %v1001
      %v1054 = vpack.c.b16 %v1006, %v1004
      %v1055 = vpack.c.b16 %v1007, %v1005
      %v1056 = vpack.c.b16 %v1010, %v1008
      %v1057 = vpack.c.b16 %v1011, %v1009
      %v1058 = vpack.c.b16 %v1014, %v1012
      %v1059 = vpack.c.b16 %v1015, %v1013
      %v1060 = vpack.c.b16 %v1018, %v1016
      %v1061 = vpack.c.b16 %v1019, %v1017
      %v1062 = vpack.c.b16 %v1022, %v1020
      %v1063 = vpack.c.b16 %v1023, %v1021
      %v1064 = vpack.c.b16 %v1026, %v1024
      %v1065 = vpack.c.b16 %v1027, %v1025
      %v1066 = vpack.c.b16 %v1030, %v1028
      %v1067 = vpack.c.b16 %v1031, %v1029
      %v1068 = vpack.c.b16 %v1034, %v1032
      %v1069 = vpack.c.b16 %v1035, %v1033
      %v1070 = vpack.c.b16 %v1038, %v1036
      %v1071 = vpack.c.b16 %v1039, %v1037
      %1104 = vmatprep.subr.bf16.mxu0 %v1041
      %1105 = vmatpush1.bf16.msra.mxu0 %v1040
      %1106 = vmatprep.subr.bf16.mxu0 %v1043
      %1107 = vmatpush1.bf16.msra.mxu0 %v1042
      %1108 = vmatprep.subr.bf16.mxu0 %v1045
      %1109 = vmatpush1.bf16.msra.mxu0 %v1044
      %1110 = vmatprep.subr.bf16.mxu0 %v1047
      %1111 = vmatpush1.bf16.msra.mxu0 %v1046
      %1112 = vmatprep.subr.bf16.mxu0 %v1049
      %1113 = vmatpush1.bf16.msra.mxu0 %v1048
      %1114 = vmatprep.subr.bf16.mxu0 %v1051
      %1115 = vmatpush1.bf16.msra.mxu0 %v1050
      %1116 = vmatprep.subr.bf16.mxu0 %v1053
      %1117 = vmatpush1.bf16.msra.mxu0 %v1052
      %1118 = vmatprep.subr.bf16.mxu0 %v1055
      %1119 = vmatpush1.bf16.msra.mxu0 %v1054
      %1120 = vmatprep.subr.bf16.mxu0 %v1057
      %1121 = vmatpush1.bf16.msra.mxu0 %v1056
      %1122 = vmatprep.subr.bf16.mxu0 %v1059
      %1123 = vmatpush1.bf16.msra.mxu0 %v1058
      %1124 = vmatprep.subr.bf16.mxu0 %v1061
      %1125 = vmatpush1.bf16.msra.mxu0 %v1060
      %1126 = vmatprep.subr.bf16.mxu0 %v1063
      %1127 = vmatpush1.bf16.msra.mxu0 %v1062
      %1128 = vmatprep.subr.bf16.mxu0 %v1065
      %1129 = vmatpush1.bf16.msra.mxu0 %v1064
      %1130 = vmatprep.subr.bf16.mxu0 %v1067
      %1131 = vmatpush1.bf16.msra.mxu0 %v1066
      %1132 = vmatprep.subr.bf16.mxu0 %v1069
      %1133 = vmatpush1.bf16.msra.mxu0 %v1068
      %1134 = vmatprep.subr.bf16.mxu0 %v1071
      %1135 = vmatpush1.bf16.msra.mxu0 %v1070
      %1136 = vmatprep.mubr.bf16.mxu0 %v893
      %1137 = vmatmul.mubr.bf16.gmra.mrb[0].mxu0 %v892
      %v1138 = vpop.f32.mrb[0].mxu0
      %v1139 = vadd.f32 %v937, %v1138
      %v1140 = vpop.f32.mrb[0].mxu0
      %v1141 = vadd.f32 %v941, %v1140
      %v1142 = vpop.f32.mrb[0].mxu0
      %v1143 = vadd.f32 %v937, %v1142
      %v1144 = vpop.f32.mrb[0].mxu0
      %v1145 = vadd.f32 %v941, %v1144
      %1146 = vmatprep.mubr.bf16.mxu0 %v895
      %1147 = vmatmul.mubr.bf16.gmra.mrb[0].mxu0 %v894
      %v1148 = vpop.f32.mrb[0].mxu0
      %v1149 = vadd.f32 %v937, %v1148
      %v1150 = vpop.f32.mrb[0].mxu0
      %v1151 = vadd.f32 %v941, %v1150
      %v1152 = vpop.f32.mrb[0].mxu0
      %v1153 = vadd.f32 %v937, %v1152
      %v1154 = vpop.f32.mrb[0].mxu0
      %v1155 = vadd.f32 %v941, %v1154
      %1156 = vmatprep.mubr.bf16.mxu0 %v897
      %1157 = vmatmul.mubr.bf16.gmra.mrb[0].mxu0 %v896
      %v1158 = vpop.f32.mrb[0].mxu0
      %v1159 = vadd.f32 %v937, %v1158
      %v1160 = vpop.f32.mrb[0].mxu0
      %v1161 = vadd.f32 %v941, %v1160
      %v1162 = vpop.f32.mrb[0].mxu0
      %v1163 = vadd.f32 %v937, %v1162
      %v1164 = vpop.f32.mrb[0].mxu0
      %v1165 = vadd.f32 %v941, %v1164
      %1166 = vmatprep.mubr.bf16.mxu0 %v899
      %1167 = vmatmul.mubr.bf16.gmra.mrb[0].mxu0 %v898
      %v1168 = vpop.f32.mrb[0].mxu0
      %v1169 = vadd.f32 %v937, %v1168
      %v1170 = vpop.f32.mrb[0].mxu0
      %v1171 = vadd.f32 %v941, %v1170
      %v1172 = vpop.f32.mrb[0].mxu0
      %v1173 = vadd.f32 %v937, %v1172
      %v1174 = vpop.f32.mrb[0].mxu0
      %v1175 = vadd.f32 %v941, %v1174
      %1176 = vdwg.mxu0
      %v1177 = vmax.f32 %v1139, 0.0
      %v1178 = vmax.f32 %v1141, 0.0
      %v1179 = vmax.f32 %v1143, 0.0
      %v1180 = vmax.f32 %v1145, 0.0
      %v1181 = vmax.f32 %v1149, 0.0
      %v1182 = vmax.f32 %v1151, 0.0
      %v1183 = vmax.f32 %v1153, 0.0
      %v1184 = vmax.f32 %v1155, 0.0
      %v1185 = vmax.f32 %v1159, 0.0
      %v1186 = vmax.f32 %v1161, 0.0
      %v1187 = vmax.f32 %v1163, 0.0
      %v1188 = vmax.f32 %v1165, 0.0
      %v1189 = vmax.f32 %v1169, 0.0
      %v1190 = vmax.f32 %v1171, 0.0
      %v1191 = vmax.f32 %v1173, 0.0
      %v1192 = vmax.f32 %v1175, 0.0
      %v1193 = vld [vmem:[%s5] sm:$0x3]
      %v1195 = vlaneseq
      %v1196 = vshrl.u32 %v1195, 7
      %v1197 = vsub.s32 0, %v1196
      %v1198 = vrot.slane %v1193, %v1197
      %v1199 = vlaneseq
      %v1200 = vshrl.u32 %v1199, 7
      %v1201 = vsub.s32 1, %v1200
      %v1202 = vrot.slane %v1193, %v1201
      %v1205 = vmul.f32 %v1177, %v1198
      %v1206 = vmul.f32 %v1178, %v1202
      %v1207 = vmul.f32 %v1179, %v1198
      %v1208 = vmul.f32 %v1180, %v1202
      %v1209 = vmul.f32 %v1181, %v1198
      %v1210 = vmul.f32 %v1182, %v1202
      %v1211 = vmul.f32 %v1183, %v1198
      %v1212 = vmul.f32 %v1184, %v1202
      %v1213 = vmul.f32 %v1185, %v1198
      %v1214 = vmul.f32 %v1186, %v1202
      %v1215 = vmul.f32 %v1187, %v1198
      %v1216 = vmul.f32 %v1188, %v1202
      %v1217 = vmul.f32 %v1189, %v1198
      %v1218 = vmul.f32 %v1190, %v1202
      %v1219 = vmul.f32 %v1191, %v1198
      %v1220 = vmul.f32 %v1192, %v1202
      %v1221 = vadd.f32 %v1205, %v1206
      %1222 = vadd.xlane.f32.xlu0 %v1221
      %v1223 = vpop.xlane.xlu0 %1222
      %v1224 = vadd.f32 %v1207, %v1208
      %1225 = vadd.xlane.f32.xlu0 %v1224
      %v1226 = vpop.xlane.xlu0 %1225
      %v1227 = vadd.f32 %v1209, %v1210
      %1228 = vadd.xlane.f32.xlu0 %v1227
      %v1229 = vpop.xlane.xlu0 %1228
      %v1230 = vadd.f32 %v1211, %v1212
      %1231 = vadd.xlane.f32.xlu0 %v1230
      %v1232 = vpop.xlane.xlu0 %1231
      %v1233 = vadd.f32 %v1213, %v1214
      %1234 = vadd.xlane.f32.xlu0 %v1233
      %v1235 = vpop.xlane.xlu0 %1234
      %v1236 = vadd.f32 %v1215, %v1216
      %1237 = vadd.xlane.f32.xlu0 %v1236
      %v1238 = vpop.xlane.xlu0 %1237
      %v1239 = vadd.f32 %v1217, %v1218
      %1240 = vadd.xlane.f32.xlu0 %v1239
      %v1241 = vpop.xlane.xlu0 %1240
      %v1242 = vadd.f32 %v1219, %v1220
      %1243 = vadd.xlane.f32.xlu0 %v1242
      %v1244 = vpop.xlane.xlu0 %1243
      %s1245 = sld [smem:[#allocation2]]
      %v1246 = vstv %s1245
      %v1247 = vadd.f32 %v1223, %v1246
      %v1248 = vadd.f32 %v1226, %v1246
      %v1249 = vadd.f32 %v1229, %v1246
      %v1250 = vadd.f32 %v1232, %v1246
      %v1251 = vadd.f32 %v1235, %v1246
      %v1252 = vadd.f32 %v1238, %v1246
      %v1253 = vadd.f32 %v1241, %v1246
      %v1254 = vadd.f32 %v1244, %v1246
      %vm1255 = vcmask 7168
      %1256 = vst.msk [vmem:[%s284] sm:$0xff] %vm1255, %v1247
      %1257 = vst.msk [vmem:[%s284 + $0x8] sm:$0xff] %vm1255, %v1248
      %1258 = vst.msk [vmem:[%s284 + $0x10] sm:$0xff] %vm1255, %v1249
      %1259 = vst.msk [vmem:[%s284 + $0x18] sm:$0xff] %vm1255, %v1250
      %1260 = vst.msk [vmem:[%s284 + $0x20] sm:$0xff] %vm1255, %v1251
      %1261 = vst.msk [vmem:[%s284 + $0x28] sm:$0xff] %vm1255, %v1252
      %1262 = vst.msk [vmem:[%s284 + $0x30] sm:$0xff] %vm1255, %v1253
      %1263 = vst.msk [vmem:[%s284 + $0x38] sm:$0xff] %vm1255, %v1254
      %s1264 = smul.u32 8, %s19
      %p1265 = scmp.lt.s32.totalorder %s1264, 15
      %s1266 = scalar_select %p1265, %s1264, 15
      %s1267 = smul.addr %s1266, 8
      %s1268 = scalar_lea.vmem %s7, %s1267
      // Predicated region
      $region49: #{da_rcnn_forward.1} parent=47 // pred_check
        %p1269 = pneg %p189
      $region50: #{da_rcnn_forward.1} parent=47 // pred_check_branch
        %1271 = sbr.rel (%p1269) target = $region52
      $region51: #{da_rcnn_forward.1} parent=47 // pred_region
        %s1272 = smul.u32 8, %s19
      $region52: #{da_rcnn_forward.1} parent=47 // pred_fallthru
        _
    $region48: #{da_rcnn_forward.1} parent=5 // pred_fallthru
      _
    %p1273 = scmp.le.s32.totalorder 2, %s14
    // Predicated region
    $region53: #{da_rcnn_forward.1} parent=5 // pred_check
      %p1274 = pneg %p1273
    $region54: #{da_rcnn_forward.1} parent=5 // pred_check_branch
      %1276 = sbr.rel (%p1274) target = $region56
    $region55: #{da_rcnn_forward.1} parent=5 // pred_region
      %s1277 = ssub.s32 %s14, 2
      // Predicated region
      $region57: #{da_rcnn_forward.1} parent=55 // pred_check
        %p1278 = pneg %p195
      $region58: #{da_rcnn_forward.1} parent=55 // pred_check_branch
        %1280 = sbr.rel (%p1278) target = $region60
      $region59: #{da_rcnn_forward.1} parent=55 // pred_region
        %s1281 = smul.u32 8, %s20
        %p1282 = scmp.lt.s32.totalorder %s1281, 15
        %s1283 = scalar_select %p1282, %s1281, 15
        %s1284 = smul.addr %s1283, 8
        %s1285 = scalar_lea.vmem %s7, %s1284
      $region60: #{da_rcnn_forward.1} parent=55 // pred_fallthru
        _
    $region56: #{da_rcnn_forward.1} parent=5 // pred_fallthru
      _
  $region6: #{da_rcnn_forward.1} parent=0 // loop_footer
    %s18 = sadd.s32 1, %s14
  $region7: #{da_rcnn_forward.1} parent=0 // loop_footer_branch
    %13 = sbr.rel target = $region3
  $region8: #{da_rcnn_forward.1} parent=0 // loop_exit
    _

</llo_original>
